<compile_context>
chip_gen: v7x
topology: tpu7x:2x2x1
jax: 0.10.0
libtpu: 0.0.40
codegen_flags: <defaults>
</compile_context>

<pallas_src>
import jax
import jax.numpy as jnp
from jax.experimental import pallas as pl
from jax.experimental.pallas import tpu as pltpu

IN_FEATURES = 3
OUT_FEATURES = 64
K_PAD = 8                      # packed contraction dim: 2*3 features, zero-padded to 8
N_TILED = 2 * OUT_FEATURES     # 128 lanes: [even-row outputs | odd-row outputs]


def linear_k3_kernel(xp_ref, w_ref, b_ref, o_ref):
    """Row-pair-packed Linear(3, 64) as one small MXU dot + bias add.

    xp_ref: (MP2, 8)    packed rows: row i = [x[2i, 0:3], x[2i+1, 0:3], 0, 0]
    w_ref : (8, 128)    block-diagonal weights:
                          rows 0:3, lanes   0:64  = w  (even logical row)
                          rows 3:6, lanes 64:128  = w  (odd  logical row)
    b_ref : (1, 128)    lane-tiled bias: [b | b]
    o_ref : (MP2, 128)  packed rows: row i = [y[2i, :], y[2i+1, :]]
    """
    acc = jnp.dot(xp_ref[...], w_ref[...], preferred_element_type=jnp.float32)
    # Single lane-dense (128-wide) unmasked store.
    o_ref[...] = (acc + b_ref[...]).astype(o_ref.dtype)


def _linear_pallas(xp, w8, bt):
    """yp = xp @ w8 + bt for xp:(MP2,8), w8:(8,128), bt:(1,128) -> (MP2,128)."""
    MP2 = xp.shape[0]
    itemsize = xp.dtype.itemsize
    cost = pl.CostEstimate(
        flops=2 * MP2 * K_PAD * N_TILED + MP2 * N_TILED,
        transcendentals=0,
        bytes_accessed=itemsize
        * (MP2 * K_PAD + K_PAD * N_TILED + N_TILED + MP2 * N_TILED),
    )
    return pl.pallas_call(
        linear_k3_kernel,
        out_shape=jax.ShapeDtypeStruct((MP2, N_TILED), xp.dtype),
        # Working set < 64 KiB: one grid point, full-array blocks in VMEM.
        in_specs=[
            pl.BlockSpec((MP2, K_PAD), lambda: (0, 0)),
            pl.BlockSpec((K_PAD, N_TILED), lambda: (0, 0)),
            pl.BlockSpec((1, N_TILED), lambda: (0, 0)),
        ],
        out_specs=pl.BlockSpec((MP2, N_TILED), lambda: (0, 0)),
        compiler_params=pltpu.CompilerParams(vmem_limit_bytes=1 << 20),
        cost_estimate=cost,
    )(xp, w8, bt)


@jax.jit
def net_forward(x, w8, bt):
    """x: (N, L, 3) -> (N, L, 64).  Pad / pack / unpack all fused under jit."""
    n, l, c = x.shape
    M = n * l
    x2d = x.reshape(M, c)

    # Pad M so the packed sublane dim (M_pad // 2) is a multiple of 8.
    M_pad = ((M + 15) // 16) * 16
    if M_pad != M:  # static under jit
        x2d = jnp.pad(x2d, ((0, M_pad - M), (0, 0)))
    MP2 = M_pad // 2

    # Pack two consecutive logical rows per physical row (free reshape) and
    # zero-pad the packed K from 6 to 8 (aligned MXU contraction dim).
    xp = jnp.pad(x2d.reshape(MP2, 2 * c), ((0, 0), (0, K_PAD - 2 * c)))

    yp = _linear_pallas(xp, w8, bt)

    # Unpack: (MP2, 128) -> (M_pad, 64) -> slice to (M, 64).  Pure reshape.
    return yp.reshape(M_pad, OUT_FEATURES)[:M].reshape(n, l, OUT_FEATURES)


class NetPallas:
    """JAX/Pallas port of the PyTorch Net (fc1 = Linear(3, 64))."""

    def __init__(self, key):
        k_w, k_b = jax.random.split(key)
        # Deterministic init mimicking torch.nn.Linear's default
        # (uniform in [-1/sqrt(fan_in), 1/sqrt(fan_in)]).
        bound = 1.0 / (IN_FEATURES ** 0.5)
        # Stored as (K, N) so the forward is x @ w (no transpose).
        self.w = jax.random.uniform(
            k_w, (IN_FEATURES, OUT_FEATURES), jnp.float32, -bound, bound
        )
        self.b = jax.random.uniform(
            k_b, (OUT_FEATURES,), jnp.float32, -bound, bound
        )

        # Hoisted (once, not per call): block-diagonal weight that folds the
        # even/odd row-pair lane selection into the MXU contraction, and a
        # lane-tiled bias.
        w8 = jnp.zeros((K_PAD, N_TILED), jnp.float32)
        w8 = w8.at[0:IN_FEATURES, 0:OUT_FEATURES].set(self.w)
        w8 = w8.at[IN_FEATURES:2 * IN_FEATURES, OUT_FEATURES:N_TILED].set(self.w)
        self.w8 = w8
        self.bt = jnp.concatenate([self.b, self.b]).reshape(1, N_TILED)

    def __call__(self, x):
        # x: (N, L, C) = (1, 100, 3), matching the PyTorch input convention.
        return net_forward(x, self.w8, self.bt)


if __name__ == "__main__":
    key = jax.random.PRNGKey(0)
    k_param, k_x = jax.random.split(key)

    net = NetPallas(k_param)
    x = jax.random.normal(k_x, (1, 100, 3), dtype=jnp.float32)

    out = jax.block_until_ready(net(x))

    # Sanity check against plain-JAX reference.
    ref = (x.reshape(-1, IN_FEATURES) @ net.w + net.b).reshape(1, 100, OUT_FEATURES)
    assert out.shape == (1, 100, OUT_FEATURES)
    assert jnp.allclose(out, ref, atol=1e-5, rtol=1e-5)

    print("KERNEL_OK")
</pallas_src>

<mosaic_0001>
module attributes {stable_mosaic.version = 11 : i64} {
  func.func @linear_k3_kernel(%arg0: memref<56x8xf32, #tpu.memory_space<vmem>>, %arg1: memref<8x128xf32, #tpu.memory_space<vmem>>, %arg2: memref<1x128xf32, #tpu.memory_space<vmem>>, %arg3: memref<56x128xf32, #tpu.memory_space<vmem>>) attributes {dimension_semantics = [], scalar_prefetch = 0 : i64, scratch_operands = 0 : i64, tpu.core_type = #tpu.core_type<tc>} {
    %c0 = arith.constant 0 : index
    %c0_0 = arith.constant 0 : index
    %0 = vector.load %arg0[%c0, %c0_0] : memref<56x8xf32, #tpu.memory_space<vmem>>, vector<56x8xf32>
    %c0_1 = arith.constant 0 : index
    %c0_2 = arith.constant 0 : index
    %1 = vector.load %arg1[%c0_1, %c0_2] : memref<8x128xf32, #tpu.memory_space<vmem>>, vector<8x128xf32>
    %cst = arith.constant dense<0.000000e+00> : vector<56x128xf32>
    %2 = tpu.matmul %0, %1, %cst {dimension_numbers = #tpu.dot_dimension_numbers<[1], [0], [0], [1], [0, 0, 1, 1], [], []>} : vector<56x8xf32>, vector<8x128xf32>, vector<56x128xf32> -> vector<56x128xf32>
    %c0_3 = arith.constant 0 : index
    %c0_4 = arith.constant 0 : index
    %3 = vector.load %arg2[%c0_3, %c0_4] : memref<1x128xf32, #tpu.memory_space<vmem>>, vector<1x128xf32>
    %4 = vector.broadcast %3 : vector<1x128xf32> to vector<56x128xf32>
    %5 = arith.addf %2, %4 : vector<56x128xf32>
    %c0_5 = arith.constant 0 : index
    %c0_6 = arith.constant 0 : index
    %6 = vector.load %arg3[%c0_5, %c0_6] : memref<56x128xf32, #tpu.memory_space<vmem>>, vector<56x128xf32>
    tpu.vector_store %arg3[%c0_5, %c0_6], %5 {strides = array<i32>} : memref<56x128xf32, #tpu.memory_space<vmem>>, vector<56x128xf32>,
    return
  }
}

</mosaic_0001>

<llo_original>
// kernel: net_forward.1
$region0: #{net_forward.1}
  #allocation0 [shape = 'u32[]', space=smem, size = 0x4, offset = 0x4, fixed_abs, tag = 'smem constant byte address 0x4 - core index']
  #allocation1 [shape = 'u32[144,128]{1,0:T(1,128)}', space=vmem, size = 0x12000, scoped, tag = 'internal scratch']
  %s0 = inlined_call_operand.vmem [shape: f32[56,8], index: 0, kind: input, shape index: {}]
  %s1 = inlined_call_operand.vmem [shape: f32[8,128], index: 1, kind: input, shape index: {}]
  %s2 = inlined_call_operand.vmem [shape: f32[1,128], index: 2, kind: input, shape index: {}]
  %s3 = inlined_call_operand.vmem [shape: f32[56,128], index: 3, kind: output, shape index: {}]
  %s4 = sld [smem:[#allocation0]]
  $region22: #{net_forward.1} parent=0
    _
  %s6 = ssub.s32 1, %s4
  %s7 = scalar_select 0, %s6, %s4
  // Predicated region
  $region2: #{net_forward.1} parent=0 // pred_check
    _
  $region3: #{net_forward.1} parent=0 // pred_check_branch
    %9 = sbr.rel (0) target = $region5
  $region4: #{net_forward.1} parent=0 // pred_region
    _
  $region5: #{net_forward.1} parent=0 // pred_fallthru
    _
  // Predicated region
  $region6: #{net_forward.1} parent=0 // pred_check
    _
  $region7: #{net_forward.1} parent=0 // pred_check_branch
    %11 = sbr.rel (0) target = $region9
  $region8: #{net_forward.1} parent=0 // pred_region
    _
  $region9: #{net_forward.1} parent=0 // pred_fallthru
    _
  // Predicated region
  $region10: #{net_forward.1} parent=0 // pred_check
    _
  $region11: #{net_forward.1} parent=0 // pred_check_branch
    %13 = sbr.rel (0) target = $region13
  $region12: #{net_forward.1} parent=0 // pred_region
    _
  $region13: #{net_forward.1} parent=0 // pred_fallthru
    _
  %v14 = vld [vmem:[%s0] sm:$0xff]
  %v15 = vld [vmem:[%s0 + $0x8] sm:$0xff]
  %v16 = vld [vmem:[%s0 + $0x10] sm:$0xff]
  %v17 = vld [vmem:[%s0 + $0x18] sm:$0xff]
  %v18 = vld [vmem:[%s0 + $0x20] sm:$0xff]
  %v19 = vld [vmem:[%s0 + $0x28] sm:$0xff]
  %v20 = vld [vmem:[%s0 + $0x30] sm:$0xff]
  %v21 = vld [vmem:[%s1] sm:$0xff]
  %v22 = vld [vmem:[%s2] sm:$0x1]
  %v24 = vlaneseq
  %v25 = vshrl.u32 %v24, 7
  %v26 = vsub.s32 0, %v25
  %v27 = vrot.slane %v22, %v26
  %vm29 = vcmask 64512
  %v31 = vsel %vm29, %v14, 0
  %v34 = vsel %vm29, %v15, 0
  %v37 = vsel %vm29, %v16, 0
  %v40 = vsel %vm29, %v17, 0
  %v43 = vsel %vm29, %v18, 0
  %v46 = vsel %vm29, %v19, 0
  %v49 = vsel %vm29, %v20, 0
  %51 = vmatprep.subr.mxu0 0.0
  %52 = vmatpush1.msra.mxu0 %v21
  %53 = vmatprep.subr.mxu0 0.0
  %54 = vmatpush1.msra.mxu0 0.0
  %55 = vmatprep.subr.mxu0 0.0
  %56 = vmatpush1.msra.mxu0 0.0
  %57 = vmatprep.subr.mxu0 0.0
  %58 = vmatpush1.msra.mxu0 0.0
  %59 = vmatprep.subr.mxu0 0.0
  %60 = vmatpush1.msra.mxu0 0.0
  %61 = vmatprep.subr.mxu0 0.0
  %62 = vmatpush1.msra.mxu0 0.0
  %63 = vmatprep.subr.mxu0 0.0
  %64 = vmatpush1.msra.mxu0 0.0
  %65 = vmatprep.subr.mxu0 0.0
  %66 = vmatpush1.msra.mxu0 0.0
  %67 = vmatprep.subr.mxu0 0.0
  %68 = vmatpush1.msra.mxu0 0.0
  %69 = vmatprep.subr.mxu0 0.0
  %70 = vmatpush1.msra.mxu0 0.0
  %71 = vmatprep.subr.mxu0 0.0
  %72 = vmatpush1.msra.mxu0 0.0
  %73 = vmatprep.subr.mxu0 0.0
  %74 = vmatpush1.msra.mxu0 0.0
  %75 = vmatprep.subr.mxu0 0.0
  %76 = vmatpush1.msra.mxu0 0.0
  %77 = vmatprep.subr.mxu0 0.0
  %78 = vmatpush1.msra.mxu0 0.0
  %79 = vmatprep.subr.mxu0 0.0
  %80 = vmatpush1.msra.mxu0 0.0
  %81 = vmatprep.subr.mxu0 0.0
  %82 = vmatpush1.msra.mxu0 0.0
  %83 = vmatprep.subr.mxu0 0.0
  %84 = vmatpush1.msra.mxu0 0.0
  %85 = vmatprep.subr.mxu0 0.0
  %86 = vmatpush1.msra.mxu0 0.0
  %87 = vmatprep.subr.mxu0 0.0
  %88 = vmatpush1.msra.mxu0 0.0
  %89 = vmatprep.subr.mxu0 0.0
  %90 = vmatpush1.msra.mxu0 0.0
  %91 = vmatprep.subr.mxu0 0.0
  %92 = vmatpush1.msra.mxu0 0.0
  %93 = vmatprep.subr.mxu0 0.0
  %94 = vmatpush1.msra.mxu0 0.0
  %95 = vmatprep.subr.mxu0 0.0
  %96 = vmatpush1.msra.mxu0 0.0
  %97 = vmatprep.subr.mxu0 0.0
  %98 = vmatpush1.msra.mxu0 0.0
  %99 = vmatprep.subr.mxu0 0.0
  %100 = vmatpush1.msra.mxu0 0.0
  %101 = vmatprep.subr.mxu0 0.0
  %102 = vmatpush1.msra.mxu0 0.0
  %103 = vmatprep.subr.mxu0 0.0
  %104 = vmatpush1.msra.mxu0 0.0
  %105 = vmatprep.subr.mxu0 0.0
  %106 = vmatpush1.msra.mxu0 0.0
  %107 = vmatprep.subr.mxu0 0.0
  %108 = vmatpush1.msra.mxu0 0.0
  %109 = vmatprep.subr.mxu0 0.0
  %110 = vmatpush1.msra.mxu0 0.0
  %111 = vmatprep.subr.mxu0 0.0
  %112 = vmatpush1.msra.mxu0 0.0
  %113 = vmatprep.subr.mxu0 0.0
  %114 = vmatpush1.msra.mxu0 0.0
  %115 = vmatprep.mubr.f32.mxu0 0.0
  %116 = vmatmul.mubr.f32.gmra.mrb[0].mxu0 %v31
  %v117 = vpop.f32.mrb[0].mxu0
  %v118 = vadd.f32 %v27, %v117
  %v119 = vpop.f32.mrb[0].mxu0
  %120 = vmatprep.mubr.f32.mxu0 0.0
  %121 = vmatmul.mubr.f32.gmra.mrb[0].mxu0 %v34
  %v122 = vpop.f32.mrb[0].mxu0
  %v123 = vadd.f32 %v27, %v122
  %v124 = vpop.f32.mrb[0].mxu0
  %125 = vmatprep.mubr.f32.mxu0 0.0
  %126 = vmatmul.mubr.f32.gmra.mrb[0].mxu0 %v37
  %v127 = vpop.f32.mrb[0].mxu0
  %v128 = vadd.f32 %v27, %v127
  %v129 = vpop.f32.mrb[0].mxu0
  %130 = vmatprep.mubr.f32.mxu0 0.0
  %131 = vmatmul.mubr.f32.gmra.mrb[0].mxu0 %v40
  %v132 = vpop.f32.mrb[0].mxu0
  %v133 = vadd.f32 %v27, %v132
  %v134 = vpop.f32.mrb[0].mxu0
  %135 = vmatprep.mubr.f32.mxu0 0.0
  %136 = vmatmul.mubr.f32.gmra.mrb[0].mxu0 %v43
  %v137 = vpop.f32.mrb[0].mxu0
  %v138 = vadd.f32 %v27, %v137
  %v139 = vpop.f32.mrb[0].mxu0
  %140 = vmatprep.mubr.f32.mxu0 0.0
  %141 = vmatmul.mubr.f32.gmra.mrb[0].mxu0 %v46
  %v142 = vpop.f32.mrb[0].mxu0
  %v143 = vadd.f32 %v27, %v142
  %v144 = vpop.f32.mrb[0].mxu0
  %145 = vmatprep.mubr.f32.mxu0 0.0
  %146 = vmatmul.mubr.f32.gmra.mrb[0].mxu0 %v49
  %v147 = vpop.f32.mrb[0].mxu0
  %v148 = vadd.f32 %v27, %v147
  %v149 = vpop.f32.mrb[0].mxu0
  %150 = vdwg.mxu0
  %151 = vst [vmem:[%s3] sm:$0xff] %v118
  %152 = vst [vmem:[%s3 + $0x8] sm:$0xff] %v123
  %153 = vst [vmem:[%s3 + $0x10] sm:$0xff] %v128
  %154 = vst [vmem:[%s3 + $0x18] sm:$0xff] %v133
  %155 = vst [vmem:[%s3 + $0x20] sm:$0xff] %v138
  %156 = vst [vmem:[%s3 + $0x28] sm:$0xff] %v143
  %157 = vst [vmem:[%s3 + $0x30] sm:$0xff] %v148
  // Predicated region
  $region14: #{net_forward.1} parent=0 // pred_check
    _
  $region15: #{net_forward.1} parent=0 // pred_check_branch
    %159 = sbr.rel (0) target = $region17
  $region16: #{net_forward.1} parent=0 // pred_region
    _
  $region17: #{net_forward.1} parent=0 // pred_fallthru
    _
  // Predicated region
  $region18: #{net_forward.1} parent=0 // pred_check
    _
  $region19: #{net_forward.1} parent=0 // pred_check_branch
    %161 = sbr.rel (0) target = $region21
  $region20: #{net_forward.1} parent=0 // pred_region
    _
  $region21: #{net_forward.1} parent=0 // pred_fallthru
    _

</llo_original>
